<compile_context>
chip_gen: v7x
topology: tpu7x:2x2x1
jax: 0.10.0
libtpu: 0.0.40
codegen_flags: <defaults>
</compile_context>

<pallas_src>
import jax
import jax.numpy as jnp
from jax.experimental import pallas as pl
from jax.experimental.pallas import tpu as pltpu


def _round_up(a, b):
    return ((a + b - 1) // b) * b


# ---------------------------------------------------------------------------
# resize_n_crop / warp_affine (plain JAX)
# ---------------------------------------------------------------------------
# TODO(synk): per-pixel data-dependent bilinear gather has no clean Pallas/TPU
# equivalent; the affine warp is implemented in plain JAX.
def warp_affine(image, M, dsize):
    """Bilinear affine warp. image (B,C,H,W); M (B,2,3) maps src -> dst coords."""
    B, C, H, W = image.shape
    dh, dw = dsize
    dtype = image.dtype

    # Invert the 2x3 affine so every destination pixel maps back to a src coord.
    A = M[:, :, :2].astype(jnp.float32)
    t = M[:, :, 2].astype(jnp.float32)
    det = A[:, 0, 0] * A[:, 1, 1] - A[:, 0, 1] * A[:, 1, 0]
    inv00 = A[:, 1, 1] / det
    inv01 = -A[:, 0, 1] / det
    inv10 = -A[:, 1, 0] / det
    inv11 = A[:, 0, 0] / det
    ti0 = -(inv00 * t[:, 0] + inv01 * t[:, 1])
    ti1 = -(inv10 * t[:, 0] + inv11 * t[:, 1])

    ys, xs = jnp.meshgrid(jnp.arange(dh, dtype=jnp.float32),
                          jnp.arange(dw, dtype=jnp.float32), indexing="ij")
    sx = inv00[:, None, None] * xs + inv01[:, None, None] * ys + ti0[:, None, None]
    sy = inv10[:, None, None] * xs + inv11[:, None, None] * ys + ti1[:, None, None]

    x0 = jnp.floor(sx)
    y0 = jnp.floor(sy)
    wx = (sx - x0)[:, None]
    wy = (sy - y0)[:, None]

    flat = image.reshape(B, C, H * W).astype(jnp.float32)

    def gather(ix, iy):
        inb = (ix >= 0) & (ix <= W - 1) & (iy >= 0) & (iy <= H - 1)
        ixc = jnp.clip(ix, 0, W - 1).astype(jnp.int32)
        iyc = jnp.clip(iy, 0, H - 1).astype(jnp.int32)
        idx = iyc * W + ixc                                        # (B, dh, dw)
        idx = jnp.broadcast_to(idx[:, None], (B, C, dh, dw)).reshape(B, C, dh * dw)
        vals = jnp.take_along_axis(flat, idx, axis=2).reshape(B, C, dh, dw)
        return vals * inb[:, None].astype(jnp.float32)

    v00 = gather(x0, y0)
    v10 = gather(x0 + 1.0, y0)
    v01 = gather(x0, y0 + 1.0)
    v11 = gather(x0 + 1.0, y0 + 1.0)
    out = (v00 * (1.0 - wx) * (1.0 - wy) + v10 * wx * (1.0 - wy)
           + v01 * (1.0 - wx) * wy + v11 * wx * wy)
    return out.astype(dtype)


def resize_n_crop(image, M, dsize=112):
    return warp_affine(image, M, dsize=(dsize, dsize))


# ---------------------------------------------------------------------------
# Pallas kernel 1: preprocess  y = 2*x - 1   (lane-dense streaming)
# ---------------------------------------------------------------------------
def _preprocess_kernel(x_ref, o_ref):
    x = x_ref[...]
    o_ref[...] = (2.0 * x - 1.0).astype(o_ref.dtype)


def preprocess_pallas(x, *, row_block=1024):
    """Elementwise 2*x - 1, streamed through VMEM in (rows, 128) lane-dense blocks."""
    dtype = x.dtype
    shape = x.shape
    n = x.size
    lanes = 128
    rows = pl.cdiv(n, lanes)
    tb = min(row_block, _round_up(rows, 8))
    rows_pad = _round_up(rows, tb)

    flat = jnp.ravel(x)
    flat = jnp.pad(flat, (0, rows_pad * lanes - n))
    x2d = flat.reshape(rows_pad, lanes)

    out = pl.pallas_call(
        _preprocess_kernel,
        out_shape=jax.ShapeDtypeStruct((rows_pad, lanes), dtype),
        grid_spec=pltpu.PrefetchScalarGridSpec(
            num_scalar_prefetch=0,
            grid=(rows_pad // tb,),
            in_specs=[pl.BlockSpec((tb, lanes), lambda i: (i, 0))],
            out_specs=pl.BlockSpec((tb, lanes), lambda i: (i, 0)),
        ),
        compiler_params=pltpu.CompilerParams(
            dimension_semantics=("parallel",)),
    )(x2d)
    return out.reshape(-1)[:n].reshape(shape)


# ---------------------------------------------------------------------------
# Pallas kernel 2: fused L2-normalize + row-wise cosine similarity
# ---------------------------------------------------------------------------
def _cosine_kernel(a_ref, b_ref, o_ref):
    # Stream native dtype (e.g. bf16) over HBM; upcast per-tile in-kernel.
    a = a_ref[...].astype(jnp.float32)
    b = b_ref[...].astype(jnp.float32)
    aa = jnp.sum(a * a, axis=-1, keepdims=True)
    bb = jnp.sum(b * b, axis=-1, keepdims=True)
    ab = jnp.sum(a * b, axis=-1, keepdims=True)
    eps = 1e-12  # matches torch.nn.functional.normalize default
    na = jnp.maximum(jnp.sqrt(aa), eps)
    nb = jnp.maximum(jnp.sqrt(bb), eps)
    o_ref[...] = ab / (na * nb)


def cosine_similarity_pallas(feat_a, feat_b, *, row_block=256):
    """Row-wise cosine similarity of two (B, D) feature matrices.

    Equals dot(F.normalize(a), F.normalize(b)) per row. Per-row results are
    written as partial outputs and reduced in the wrapper — no serial scalar
    accumulator, so the grid axis stays 'parallel'.
    """
    B, D = feat_a.shape
    tb = min(row_block, _round_up(B, 8))
    b_pad = _round_up(B, tb)
    if b_pad != B:
        pad = ((0, b_pad - B), (0, 0))
        feat_a = jnp.pad(feat_a, pad)
        feat_b = jnp.pad(feat_b, pad)

    cos = pl.pallas_call(
        _cosine_kernel,
        out_shape=jax.ShapeDtypeStruct((b_pad, 1), jnp.float32),
        grid_spec=pltpu.PrefetchScalarGridSpec(
            num_scalar_prefetch=0,
            grid=(b_pad // tb,),
            in_specs=[pl.BlockSpec((tb, D), lambda i: (i, 0)),
                      pl.BlockSpec((tb, D), lambda i: (i, 0))],
            out_specs=pl.BlockSpec((tb, 1), lambda i: (i, 0)),
        ),
        compiler_params=pltpu.CompilerParams(
            dimension_semantics=("parallel",)),
    )(feat_a, feat_b)
    return cos[:B, 0]


# ---------------------------------------------------------------------------
# PerceptualLoss.forward
# ---------------------------------------------------------------------------
def perceptual_loss(image_a, image_b, M, recog_net_apply, input_size=112):
    wa = resize_n_crop(image_a, M, dsize=input_size)
    wb = resize_n_crop(image_b, M, dsize=input_size)
    pa = preprocess_pallas(wa)
    pb = preprocess_pallas(wb)
    # TODO(synk): recog_net is an external pretrained face-recognition CNN
    # (ArcFace-style); it is supplied by the caller and not translated to Pallas.
    fa = recog_net_apply(pa)
    fb = recog_net_apply(pb)
    cos = cosine_similarity_pallas(fa, fb)
    return jnp.sum(1.0 - cos) / cos.shape[0]


def perceptual_loss_ref(image_a, image_b, M, recog_net_apply, input_size=112):
    wa = resize_n_crop(image_a, M, dsize=input_size)
    wb = resize_n_crop(image_b, M, dsize=input_size)
    pa = 2.0 * wa - 1.0
    pb = 2.0 * wb - 1.0
    fa = recog_net_apply(pa).astype(jnp.float32)
    fb = recog_net_apply(pb).astype(jnp.float32)
    na = fa / jnp.maximum(jnp.linalg.norm(fa, axis=-1, keepdims=True), 1e-12)
    nb = fb / jnp.maximum(jnp.linalg.norm(fb, axis=-1, keepdims=True), 1e-12)
    cos = jnp.sum(na * nb, axis=-1)
    return jnp.sum(1.0 - cos) / cos.shape[0]


if __name__ == "__main__":
    key = jax.random.PRNGKey(0)
    k_img_a, k_img_b, k_w = jax.random.split(key, 3)

    batch = 2
    channels = 3
    src_hw = 32
    input_size = 16          # module default is 112; kept small for the test
    feat_dim = 128           # stand-in embedding width (lane-dense)

    image_a = jax.random.uniform(k_img_a, (batch, channels, src_hw, src_hw),
                                 dtype=jnp.float32)
    image_b = jax.random.uniform(k_img_b, (batch, channels, src_hw, src_hw),
                                 dtype=jnp.float32)

    # src -> dst affines (roughly: scale the 32x32 source into the 16x16 crop).
    M = jnp.stack([
        jnp.array([[0.50, 0.02, 0.5], [-0.02, 0.50, 0.5]], dtype=jnp.float32),
        jnp.array([[0.45, 0.00, 1.0], [0.00, 0.45, 1.0]], dtype=jnp.float32),
    ])

    # TODO(synk): stand-in for the external pretrained recognition network
    # (fixed plain-JAX linear embedder), used only to exercise the full forward.
    w_proj = (jax.random.normal(
        k_w, (channels * input_size * input_size, feat_dim), dtype=jnp.float32)
        / jnp.sqrt(float(channels * input_size * input_size)))

    def recog_net_apply(img):
        return jnp.dot(img.reshape(img.shape[0], -1), w_proj)

    out = perceptual_loss(image_a, image_b, M, recog_net_apply,
                          input_size=input_size)
    out = jax.block_until_ready(out)

    ref = jax.block_until_ready(
        perceptual_loss_ref(image_a, image_b, M, recog_net_apply,
                            input_size=input_size))
    assert jnp.allclose(out, ref, rtol=1e-5, atol=1e-5), (out, ref)

    print("KERNEL_OK")
</pallas_src>

<mosaic_0001>
module attributes {stable_mosaic.version = 11 : i64} {
  func.func @_preprocess_kernel(%arg0: i32, %arg1: memref<16x128xf32, #tpu.memory_space<vmem>>, %arg2: memref<16x128xf32, #tpu.memory_space<vmem>>) attributes {dimension_semantics = [#tpu.dimension_semantics<parallel>], iteration_bounds = array<i64: 1>, scalar_prefetch = 0 : i64, scratch_operands = 0 : i64, tpu.core_type = #tpu.core_type<tc>, window_params = [{transform_indices = @transform_0, window_bounds = array<i64: 16, 128>}, {transform_indices = @transform_1, window_bounds = array<i64: 16, 128>}]} {
    %c0 = arith.constant 0 : index
    %c0_0 = arith.constant 0 : index
    %0 = vector.load %arg1[%c0, %c0_0] : memref<16x128xf32, #tpu.memory_space<vmem>>, vector<16x128xf32>
    %cst = arith.constant 2.000000e+00 : f32
    %1 = vector.broadcast %cst : f32 to vector<16x128xf32>
    %2 = arith.mulf %1, %0 : vector<16x128xf32>
    %cst_1 = arith.constant 1.000000e+00 : f32
    %3 = vector.broadcast %cst_1 : f32 to vector<16x128xf32>
    %4 = arith.subf %2, %3 : vector<16x128xf32>
    %c0_2 = arith.constant 0 : index
    %c0_3 = arith.constant 0 : index
    %5 = vector.load %arg2[%c0_2, %c0_3] : memref<16x128xf32, #tpu.memory_space<vmem>>, vector<16x128xf32>
    tpu.vector_store %arg2[%c0_2, %c0_3], %4 {strides = array<i32>} : memref<16x128xf32, #tpu.memory_space<vmem>>, vector<16x128xf32>,
    return
  }
  func.func @transform_0(%arg0: i32) -> (i32, i32) {
    %c0_i32 = arith.constant 0 : i32
    %c0_i32_0 = arith.constant 0 : i32
    return %arg0, %c0_i32 : i32, i32
  }
  func.func @transform_1(%arg0: i32) -> (i32, i32) {
    %c0_i32 = arith.constant 0 : i32
    %c0_i32_0 = arith.constant 0 : i32
    return %arg0, %c0_i32 : i32, i32
  }
}

</mosaic_0001>

<llo_original>
// kernel: tpu_custom_call.1
$region0: #{tpu_custom_call.1}
  #allocation0 [shape = 'u32[]', space=smem, size = 0x4, offset = 0x4, fixed_abs, tag = 'smem constant byte address 0x4 - core index']
  #allocation1 [shape = 'u32[144,128]{1,0:T(1,128)}', space=vmem, size = 0x12000, scoped, tag = 'internal scratch']
  %s0 = inlined_call_operand.hbm [shape: f32[16,128], index: 0, kind: input, shape index: {}]
  %s1 = inlined_call_operand.hbm [shape: f32[16,128], index: 1, kind: output, shape index: {}]
  %s2 = sld [smem:[#allocation0]]
  $region18: #{tpu_custom_call.1} parent=0
    _
  %s4 = ssub.s32 1, %s2
  %s5 = scalar_select 0, %s4, %s2
  $region1: #{tpu_custom_call.1} parent=0
    #allocation2 [shape = 'u8[8192]{0}', space=vmem, size = 0x2000, scoped, tag = 'input window, operand 0, single buffered']
    #allocation3 [shape = 's32[1]{0}', space=sflag, size = 0x4, scoped, tag = 'scoped memory for tpu_custom_call.1']
    #allocation4 [shape = 's32[1]{0}', space=sflag, size = 0x4, scoped, tag = 'scoped memory for tpu_custom_call.1']
    #allocation5 [shape = 'u8[8192]{0}', space=vmem, size = 0x2000, scoped, tag = 'output window, operand 0, single buffered']
    %6 = vsyncpa [#allocation3], 0
    %7 = vsyncpa [#allocation4], 0
    // Predicated region
    $region2: #{tpu_custom_call.1} parent=1 // pred_check
      _
    $region3: #{tpu_custom_call.1} parent=1 // pred_check_branch
      %9 = sbr.rel (0) target = $region5
    $region4: #{tpu_custom_call.1} parent=1 // pred_region
      %s11 = ssub.s32 256, 256
      %12 = vsyncadd [#allocation3], %s11
      %s13 = sshll.u32 [#allocation2], 4
      %s14 = int_to_ptr.vmem [resolvable:$true] %s13
      %19 = dma.hbm_to_vmem [thread:$0]  %s0, 256, %s14, [#allocation3], 128, 128, 8
    $region5: #{tpu_custom_call.1} parent=1 // pred_fallthru
      _
    // Predicated region
    $region6: #{tpu_custom_call.1} parent=1 // pred_check
      _
    $region7: #{tpu_custom_call.1} parent=1 // pred_check_branch
      %21 = sbr.rel (0) target = $region9
    $region8: #{tpu_custom_call.1} parent=1 // pred_region
      %22 = dma.done [#allocation3], 256
    $region9: #{tpu_custom_call.1} parent=1 // pred_fallthru
      _
    %v23 = vld [vmem:[#allocation2] sm:$0xff]
    %v24 = vld [vmem:[#allocation2 + $0x8] sm:$0xff]
    %v25 = vmul.f32 %v23, 2.0
    %v26 = vmul.f32 %v24, 2.0
    %v27 = vsub.f32 %v25, 1.0
    %v28 = vsub.f32 %v26, 1.0
    %29 = vst [vmem:[#allocation5] sm:$0xff] %v27
    %30 = vst [vmem:[#allocation5 + $0x8] sm:$0xff] %v28
    // Predicated region
    $region10: #{tpu_custom_call.1} parent=1 // pred_check
      _
    $region11: #{tpu_custom_call.1} parent=1 // pred_check_branch
      %32 = sbr.rel (0) target = $region13
    $region12: #{tpu_custom_call.1} parent=1 // pred_region
      %s34 = ssub.s32 256, 256
      %35 = vsyncadd [#allocation4], %s34
      %s36 = sshll.u32 [#allocation5], 4
      %s37 = int_to_ptr.vmem [resolvable:$true] %s36
      %42 = dma.vmem_to_hbm [thread:$0]  %s37, 256, %s1, [#allocation4], 128, 128, 8
    $region13: #{tpu_custom_call.1} parent=1 // pred_fallthru
      _
    // Predicated region
    $region14: #{tpu_custom_call.1} parent=1 // pred_check
      _
    $region15: #{tpu_custom_call.1} parent=1 // pred_check_branch
      %44 = sbr.rel (0) target = $region17
    $region16: #{tpu_custom_call.1} parent=1 // pred_region
      %45 = dma.done [#allocation4], 256
    $region17: #{tpu_custom_call.1} parent=1 // pred_fallthru
      _
    %46 = vsyncpa [#allocation3], 1
    %47 = vsyncpa [#allocation4], 1

</llo_original>
